<compile_context>
chip_gen: v5e
topology: v5e:2x2
jax: 0.10.0
libtpu: 0.0.40
codegen_flags: <defaults>
</compile_context>

<pallas_src>
import jax
import jax.numpy as jnp
from jax.experimental import pallas as pl
from jax.experimental.pallas import tpu as pltpu

AR_IN_C = 512
CLASS_NUM = 6
HIDDEN = 32


def _round_up(n, m):
    return ((n + m - 1) // m) * m


def _device_kind():
    try:
        return jax.devices()[0].device_kind.lower()
    except Exception:  # pragma: no cover - defensive
        return ""


def _default_block_b(mm_itemsize, device_kind):
    if "v7" in device_kind:
        # v7x: larger tiles amortize per-step overhead at ~3.2 TB/s HBM BW;
        # keep the double-buffered x tile <= ~16 MiB (32 MiB default scoped VMEM).
        return 4096 if mm_itemsize <= 2 else 2048
    # v5e/v6e: 1024-row tiles already reach ~85% of HBM roofline and stay
    # well under v5e's 16 MiB default scoped VMEM even at f32.
    return 1024


def _choose_tile(B, block_b, two_tc):
    """Pick a batch tile: multiple of 8 (partial last block allowed) or == B."""
    if B <= 8:
        return B  # single full block; block_shape == array dims is always legal
    if two_tc:
        # Guarantee >= 2 grid steps so the "parallel" axis uses both TensorCores.
        cand = _round_up(pl.cdiv(B, 2), 8)
    else:
        cand = _round_up(B, 8)
    tb = min(block_b, cand)
    if tb >= B:
        return B          # one full block, no ragged handling needed
    return tb             # multiple of 8; last block may be partial (masked)


def _softplus(z):
    # Stable softplus: max(z,0) + log1p(exp(-|z|)).
    # Matches torch.nn.Softplus(beta=1, threshold=20) in f32: for z > 20 the
    # log1p term underflows below ulp(z), so the result is exactly z.
    # exp argument is always <= 0, so no overflow even on garbage rows of a
    # partial last block.
    return jnp.maximum(z, 0.0) + jnp.log1p(jnp.exp(-jnp.abs(z)))


def _ar_kernel(x_ref, w1_ref, b1_ref, w2_ref, b2_ref, o_ref):
    # (TB, 512) @ (512, 32) -> f32 accumulation on the MXU, bias + softplus in f32.
    h = jnp.dot(x_ref[...], w1_ref[...], preferred_element_type=jnp.float32)
    h = _softplus(h + b1_ref[...])
    # (TB, 32) @ (32, 6) + (1, 6) -- no activation after the last Linear.
    z = jnp.dot(h.astype(w2_ref.dtype), w2_ref[...],
                preferred_element_type=jnp.float32)
    o_ref[...] = (z + b2_ref[...]).astype(o_ref.dtype)


def activity_recognizer(x, params, *, block_b=None, use_bf16=True):
    """x: (B, 512) -> logits (B, 6) float32."""
    w1, b1, w2, b2 = params
    B = x.shape[0]

    mm_dtype = jnp.bfloat16 if use_bf16 else jnp.float32
    # Ideally the producer of x already emits bf16 (the cast fuses upstream
    # under jit); inside the kernel accumulation is f32 either way.
    xq = x.astype(mm_dtype)
    w1q = w1.astype(mm_dtype)
    w2q = w2.astype(mm_dtype)
    b1f = b1.astype(jnp.float32)
    b2f = b2.astype(jnp.float32)

    kind = _device_kind()
    two_tc = "v7" in kind
    itemsize = jnp.dtype(mm_dtype).itemsize
    if block_b is None:
        block_b = _default_block_b(itemsize, kind)

    tb = _choose_tile(B, block_b, two_tc)
    grid = (pl.cdiv(B, tb),)

    flops = 2 * B * (AR_IN_C * HIDDEN + HIDDEN * CLASS_NUM)
    transcendentals = 2 * B * HIDDEN  # exp + log1p per hidden activation
    bytes_accessed = (
        B * AR_IN_C * itemsize             # x read (dominant stream)
        + B * CLASS_NUM * 4                # logits write
        + AR_IN_C * HIDDEN * itemsize      # w1
        + HIDDEN * CLASS_NUM * itemsize    # w2
        + (HIDDEN + CLASS_NUM) * 4         # biases
    )

    return pl.pallas_call(
        _ar_kernel,
        out_shape=jax.ShapeDtypeStruct((B, CLASS_NUM), jnp.float32),
        grid=grid,
        in_specs=[
            pl.BlockSpec((tb, AR_IN_C), lambda i: (i, 0)),        # x tile (pipelined)
            pl.BlockSpec((AR_IN_C, HIDDEN), lambda i: (0, 0)),    # w1 (VMEM-resident)
            pl.BlockSpec((1, HIDDEN), lambda i: (0, 0)),          # b1
            pl.BlockSpec((HIDDEN, CLASS_NUM), lambda i: (0, 0)),  # w2
            pl.BlockSpec((1, CLASS_NUM), lambda i: (0, 0)),       # b2
        ],
        out_specs=pl.BlockSpec((tb, CLASS_NUM), lambda i: (i, 0)),
        compiler_params=pltpu.CompilerParams(
            dimension_semantics=("parallel",)),   # 2-TC sharding on v7x
        cost_estimate=pl.CostEstimate(
            flops=flops,
            transcendentals=transcendentals,
            bytes_accessed=bytes_accessed),
    )(xq, w1q, b1f, w2q, b2f)


def init_params(key):
    """Deterministic init mimicking nn.Linear default (uniform +/- 1/sqrt(fan_in))."""
    k1, k2, k3, k4 = jax.random.split(key, 4)
    lim1 = 1.0 / jnp.sqrt(jnp.float32(AR_IN_C))
    lim2 = 1.0 / jnp.sqrt(jnp.float32(HIDDEN))
    # Stored as (in, out) so the kernel does x @ W.
    w1 = jax.random.uniform(k1, (AR_IN_C, HIDDEN), jnp.float32, -lim1, lim1)
    b1 = jax.random.uniform(k2, (1, HIDDEN), jnp.float32, -lim1, lim1)
    w2 = jax.random.uniform(k3, (HIDDEN, CLASS_NUM), jnp.float32, -lim2, lim2)
    b2 = jax.random.uniform(k4, (1, CLASS_NUM), jnp.float32, -lim2, lim2)
    return w1, b1, w2, b2


def _reference(x, params, mm_dtype=jnp.float32):
    w1, b1, w2, b2 = params
    h = jnp.dot(x.astype(mm_dtype), w1.astype(mm_dtype),
                preferred_element_type=jnp.float32) + b1
    h = jax.nn.softplus(h)
    return jnp.dot(h.astype(mm_dtype), w2.astype(mm_dtype),
                   preferred_element_type=jnp.float32) + b2


if __name__ == "__main__":
    key = jax.random.PRNGKey(0)
    kx, kp = jax.random.split(key, 2)

    B = 8
    x = jax.random.normal(kx, (B, AR_IN_C), jnp.float32)
    params = init_params(kp)

    # 1) Exact f32 path vs f32 reference (tight tolerance).
    out_f32 = jax.block_until_ready(activity_recognizer(x, params, use_bf16=False))
    ref_f32 = _reference(x, params, jnp.float32)
    assert out_f32.shape == (B, CLASS_NUM), out_f32.shape
    assert jnp.allclose(out_f32, ref_f32, atol=1e-5, rtol=1e-5), "f32 mismatch"

    # 2) Default bf16-input path (halves the HBM x stream) vs the same math
    #    with bf16 matmul operands / f32 accumulation, plus a loose check
    #    against the pure-f32 reference.
    out_bf16 = jax.block_until_ready(activity_recognizer(x, params))
    ref_bf16 = _reference(x, params, jnp.bfloat16)
    assert jnp.allclose(out_bf16, ref_bf16, atol=1e-3, rtol=1e-3), "bf16 mismatch"
    assert jnp.allclose(out_bf16, ref_f32, atol=5e-2, rtol=5e-2), "bf16 drift"

    # 3) Ragged batch exercising the pad-free partial-last-block path.
    B2 = 13
    x2 = jax.random.normal(kx, (B2, AR_IN_C), jnp.float32)
    out_rag = jax.block_until_ready(
        activity_recognizer(x2, params, block_b=8, use_bf16=False))
    ref_rag = _reference(x2, params, jnp.float32)
    assert out_rag.shape == (B2, CLASS_NUM), out_rag.shape
    assert jnp.allclose(out_rag, ref_rag, atol=1e-5, rtol=1e-5), "ragged mismatch"

    print("KERNEL_OK")
</pallas_src>

<mosaic_0001>
module attributes {stable_mosaic.version = 11 : i64} {
  func.func @_ar_kernel(%arg0: i32, %arg1: memref<8x512xf32, #tpu.memory_space<vmem>>, %arg2: memref<512x32xf32, #tpu.memory_space<vmem>>, %arg3: memref<1x32xf32, #tpu.memory_space<vmem>>, %arg4: memref<32x6xf32, #tpu.memory_space<vmem>>, %arg5: memref<1x6xf32, #tpu.memory_space<vmem>>, %arg6: memref<8x6xf32, #tpu.memory_space<vmem>>) attributes {dimension_semantics = [#tpu.dimension_semantics<parallel>], iteration_bounds = array<i64: 1>, scalar_prefetch = 0 : i64, scratch_operands = 0 : i64, tpu.core_type = #tpu.core_type<tc>, window_params = [{transform_indices = @transform_0, window_bounds = array<i64: 8, 512>}, {pipeline_mode = #tpu.pipeline_mode<synchronous>, transform_indices = @transform_1, window_bounds = array<i64: 512, 32>}, {pipeline_mode = #tpu.pipeline_mode<synchronous>, transform_indices = @transform_2, window_bounds = array<i64: 1, 32>}, {pipeline_mode = #tpu.pipeline_mode<synchronous>, transform_indices = @transform_3, window_bounds = array<i64: 32, 6>}, {pipeline_mode = #tpu.pipeline_mode<synchronous>, transform_indices = @transform_4, window_bounds = array<i64: 1, 6>}, {transform_indices = @transform_5, window_bounds = array<i64: 8, 6>}]} {
    %c0 = arith.constant 0 : index
    %c0_0 = arith.constant 0 : index
    %0 = vector.load %arg1[%c0, %c0_0] : memref<8x512xf32, #tpu.memory_space<vmem>>, vector<8x512xf32>
    %c0_1 = arith.constant 0 : index
    %c0_2 = arith.constant 0 : index
    %1 = vector.load %arg2[%c0_1, %c0_2] : memref<512x32xf32, #tpu.memory_space<vmem>>, vector<512x32xf32>
    %cst = arith.constant dense<0.000000e+00> : vector<8x32xf32>
    %2 = tpu.matmul %0, %1, %cst {dimension_numbers = #tpu.dot_dimension_numbers<[1], [0], [0], [1], [0, 0, 1, 1], [], []>} : vector<8x512xf32>, vector<512x32xf32>, vector<8x32xf32> -> vector<8x32xf32>
    %c0_3 = arith.constant 0 : index
    %c0_4 = arith.constant 0 : index
    %3 = vector.load %arg3[%c0_3, %c0_4] : memref<1x32xf32, #tpu.memory_space<vmem>>, vector<1x32xf32>
    %4 = vector.broadcast %3 : vector<1x32xf32> to vector<8x32xf32>
    %5 = arith.addf %2, %4 : vector<8x32xf32>
    %cst_5 = arith.constant 0.000000e+00 : f32
    %6 = vector.broadcast %cst_5 : f32 to vector<8x32xf32>
    %7 = arith.maximumf %5, %6 : vector<8x32xf32>
    %8 = math.absf %5 : vector<8x32xf32>
    %cst_6 = arith.constant 0.000000e+00 : f32
    %9 = vector.broadcast %cst_6 : f32 to vector<8x32xf32>
    %10 = arith.subf %9, %8 : vector<8x32xf32>
    %11 = math.exp %10 : vector<8x32xf32>
    %12 = math.log1p %11 : vector<8x32xf32>
    %13 = arith.addf %7, %12 : vector<8x32xf32>
    %c0_7 = arith.constant 0 : index
    %c0_8 = arith.constant 0 : index
    %14 = vector.load %arg4[%c0_7, %c0_8] : memref<32x6xf32, #tpu.memory_space<vmem>>, vector<32x6xf32>
    %cst_9 = arith.constant dense<0.000000e+00> : vector<8x6xf32>
    %15 = tpu.matmul %13, %14, %cst_9 {dimension_numbers = #tpu.dot_dimension_numbers<[1], [0], [0], [1], [0, 0, 1, 1], [], []>} : vector<8x32xf32>, vector<32x6xf32>, vector<8x6xf32> -> vector<8x6xf32>
    %c0_10 = arith.constant 0 : index
    %c0_11 = arith.constant 0 : index
    %16 = vector.load %arg5[%c0_10, %c0_11] : memref<1x6xf32, #tpu.memory_space<vmem>>, vector<1x6xf32>
    %17 = vector.broadcast %16 : vector<1x6xf32> to vector<8x6xf32>
    %18 = arith.addf %15, %17 : vector<8x6xf32>
    %c0_12 = arith.constant 0 : index
    %c0_13 = arith.constant 0 : index
    %19 = vector.load %arg6[%c0_12, %c0_13] : memref<8x6xf32, #tpu.memory_space<vmem>>, vector<8x6xf32>
    tpu.vector_store %arg6[%c0_12, %c0_13], %18 {strides = array<i32>} : memref<8x6xf32, #tpu.memory_space<vmem>>, vector<8x6xf32>,
    return
  }
  func.func @transform_0(%arg0: i32) -> (i32, i32) {
    %c0_i32 = arith.constant 0 : i32
    %c0_i32_0 = arith.constant 0 : i32
    return %arg0, %c0_i32 : i32, i32
  }
  func.func @transform_1(%arg0: i32) -> (i32, i32) {
    %c0_i32 = arith.constant 0 : i32
    %c0_i32_0 = arith.constant 0 : i32
    %c0_i32_1 = arith.constant 0 : i32
    return %c0_i32, %c0_i32_0 : i32, i32
  }
  func.func @transform_2(%arg0: i32) -> (i32, i32) {
    %c0_i32 = arith.constant 0 : i32
    %c0_i32_0 = arith.constant 0 : i32
    %c0_i32_1 = arith.constant 0 : i32
    return %c0_i32, %c0_i32_0 : i32, i32
  }
  func.func @transform_3(%arg0: i32) -> (i32, i32) {
    %c0_i32 = arith.constant 0 : i32
    %c0_i32_0 = arith.constant 0 : i32
    %c0_i32_1 = arith.constant 0 : i32
    return %c0_i32, %c0_i32_0 : i32, i32
  }
  func.func @transform_4(%arg0: i32) -> (i32, i32) {
    %c0_i32 = arith.constant 0 : i32
    %c0_i32_0 = arith.constant 0 : i32
    %c0_i32_1 = arith.constant 0 : i32
    return %c0_i32, %c0_i32_0 : i32, i32
  }
  func.func @transform_5(%arg0: i32) -> (i32, i32) {
    %c0_i32 = arith.constant 0 : i32
    %c0_i32_0 = arith.constant 0 : i32
    return %arg0, %c0_i32 : i32, i32
  }
}

</mosaic_0001>

<llo_original>
// kernel: tpu_custom_call.1
$region0: #{tpu_custom_call.1}
  #allocation0 [shape = 'u32[]', space=smem, size = 0x4, offset = 0x4, fixed_abs, tag = 'smem constant byte address 0x4 - core index']
  #allocation1 [shape = 'u32[72,128]{1,0:T(1,128)}', space=vmem, size = 0x9000, scoped, tag = 'internal scratch']
  %s0 = inlined_call_operand.vmem [shape: f32[8,512], index: 0, kind: input, shape index: {}]
  %s1 = inlined_call_operand.vmem [shape: f32[512,32], index: 1, kind: input, shape index: {}]
  %s2 = inlined_call_operand.vmem [shape: f32[1,32], index: 2, kind: input, shape index: {}]
  %s3 = inlined_call_operand.vmem [shape: f32[32,6], index: 3, kind: input, shape index: {}]
  %s4 = inlined_call_operand.vmem [shape: f32[1,6], index: 4, kind: input, shape index: {}]
  %s5 = inlined_call_operand.hbm [shape: f32[8,6], index: 5, kind: output, shape index: {}]
  %s6 = sld [smem:[#allocation0]]
  $region30: #{tpu_custom_call.1} parent=0
    _
  %s8 = ssub.s32 1, %s6
  %s9 = scalar_select 0, %s8, %s6
  $region1: #{tpu_custom_call.1} parent=0
    #allocation2 [shape = 'u8[4096]{0}', space=vmem, size = 0x1000, scoped, tag = 'output window, operand 0, single buffered']
    #allocation3 [shape = 's32[1]{0}', space=sflag, size = 0x4, scoped, tag = 'scoped memory for tpu_custom_call.1']
    %10 = vsyncpa [#allocation3], 0
    // Predicated region
    $region2: #{tpu_custom_call.1} parent=1 // pred_check
      _
    $region3: #{tpu_custom_call.1} parent=1 // pred_check_branch
      %12 = sbr.rel (0) target = $region5
    $region4: #{tpu_custom_call.1} parent=1 // pred_region
      _
    $region5: #{tpu_custom_call.1} parent=1 // pred_fallthru
      _
    // Predicated region
    $region6: #{tpu_custom_call.1} parent=1 // pred_check
      _
    $region7: #{tpu_custom_call.1} parent=1 // pred_check_branch
      %14 = sbr.rel (0) target = $region9
    $region8: #{tpu_custom_call.1} parent=1 // pred_region
      _
    $region9: #{tpu_custom_call.1} parent=1 // pred_fallthru
      _
    // Predicated region
    $region10: #{tpu_custom_call.1} parent=1 // pred_check
      _
    $region11: #{tpu_custom_call.1} parent=1 // pred_check_branch
      %16 = sbr.rel (0) target = $region13
    $region12: #{tpu_custom_call.1} parent=1 // pred_region
      _
    $region13: #{tpu_custom_call.1} parent=1 // pred_fallthru
      _
    // Predicated region
    $region14: #{tpu_custom_call.1} parent=1 // pred_check
      _
    $region15: #{tpu_custom_call.1} parent=1 // pred_check_branch
      %18 = sbr.rel (0) target = $region17
    $region16: #{tpu_custom_call.1} parent=1 // pred_region
      _
    $region17: #{tpu_custom_call.1} parent=1 // pred_fallthru
      _
    // Predicated region
    $region18: #{tpu_custom_call.1} parent=1 // pred_check
      _
    $region19: #{tpu_custom_call.1} parent=1 // pred_check_branch
      %20 = sbr.rel (0) target = $region21
    $region20: #{tpu_custom_call.1} parent=1 // pred_region
      _
    $region21: #{tpu_custom_call.1} parent=1 // pred_fallthru
      _
    %v21 = vld [vmem:[%s0] sm:$0xff]
    %v22 = vld [vmem:[%s0 + $0x8] sm:$0xff]
    %v23 = vld [vmem:[%s0 + $0x10] sm:$0xff]
    %v24 = vld [vmem:[%s0 + $0x18] sm:$0xff]
    %v25 = vld [vmem:[%s1] sm:$0xff]
    %v26 = vld [vmem:[%s1 + $0x8] sm:$0xff]
    %v27 = vld [vmem:[%s1 + $0x10] sm:$0xff]
    %v28 = vld [vmem:[%s1 + $0x18] sm:$0xff]
    %v29 = vld [vmem:[%s1 + $0x20] sm:$0xff]
    %v30 = vld [vmem:[%s1 + $0x28] sm:$0xff]
    %v31 = vld [vmem:[%s1 + $0x30] sm:$0xff]
    %v32 = vld [vmem:[%s1 + $0x38] sm:$0xff]
    %v33 = vld [vmem:[%s1 + $0x40] sm:$0xff]
    %v34 = vld [vmem:[%s1 + $0x48] sm:$0xff]
    %v35 = vld [vmem:[%s1 + $0x50] sm:$0xff]
    %v36 = vld [vmem:[%s1 + $0x58] sm:$0xff]
    %v37 = vld [vmem:[%s1 + $0x60] sm:$0xff]
    %v38 = vld [vmem:[%s1 + $0x68] sm:$0xff]
    %v39 = vld [vmem:[%s1 + $0x70] sm:$0xff]
    %v40 = vld [vmem:[%s1 + $0x78] sm:$0xff]
    %v41 = vld [vmem:[%s1 + $0x80] sm:$0xff]
    %v42 = vld [vmem:[%s1 + $0x88] sm:$0xff]
    %v43 = vld [vmem:[%s1 + $0x90] sm:$0xff]
    %v44 = vld [vmem:[%s1 + $0x98] sm:$0xff]
    %v45 = vld [vmem:[%s1 + $0xa0] sm:$0xff]
    %v46 = vld [vmem:[%s1 + $0xa8] sm:$0xff]
    %v47 = vld [vmem:[%s1 + $0xb0] sm:$0xff]
    %v48 = vld [vmem:[%s1 + $0xb8] sm:$0xff]
    %v49 = vld [vmem:[%s1 + $0xc0] sm:$0xff]
    %v50 = vld [vmem:[%s1 + $0xc8] sm:$0xff]
    %v51 = vld [vmem:[%s1 + $0xd0] sm:$0xff]
    %v52 = vld [vmem:[%s1 + $0xd8] sm:$0xff]
    %v53 = vld [vmem:[%s1 + $0xe0] sm:$0xff]
    %v54 = vld [vmem:[%s1 + $0xe8] sm:$0xff]
    %v55 = vld [vmem:[%s1 + $0xf0] sm:$0xff]
    %v56 = vld [vmem:[%s1 + $0xf8] sm:$0xff]
    %v57 = vld [vmem:[%s1 + $0x100] sm:$0xff]
    %v58 = vld [vmem:[%s1 + $0x108] sm:$0xff]
    %v59 = vld [vmem:[%s1 + $0x110] sm:$0xff]
    %v60 = vld [vmem:[%s1 + $0x118] sm:$0xff]
    %v61 = vld [vmem:[%s1 + $0x120] sm:$0xff]
    %v62 = vld [vmem:[%s1 + $0x128] sm:$0xff]
    %v63 = vld [vmem:[%s1 + $0x130] sm:$0xff]
    %v64 = vld [vmem:[%s1 + $0x138] sm:$0xff]
    %v65 = vld [vmem:[%s1 + $0x140] sm:$0xff]
    %v66 = vld [vmem:[%s1 + $0x148] sm:$0xff]
    %v67 = vld [vmem:[%s1 + $0x150] sm:$0xff]
    %v68 = vld [vmem:[%s1 + $0x158] sm:$0xff]
    %v69 = vld [vmem:[%s1 + $0x160] sm:$0xff]
    %v70 = vld [vmem:[%s1 + $0x168] sm:$0xff]
    %v71 = vld [vmem:[%s1 + $0x170] sm:$0xff]
    %v72 = vld [vmem:[%s1 + $0x178] sm:$0xff]
    %v73 = vld [vmem:[%s1 + $0x180] sm:$0xff]
    %v74 = vld [vmem:[%s1 + $0x188] sm:$0xff]
    %v75 = vld [vmem:[%s1 + $0x190] sm:$0xff]
    %v76 = vld [vmem:[%s1 + $0x198] sm:$0xff]
    %v77 = vld [vmem:[%s1 + $0x1a0] sm:$0xff]
    %v78 = vld [vmem:[%s1 + $0x1a8] sm:$0xff]
    %v79 = vld [vmem:[%s1 + $0x1b0] sm:$0xff]
    %v80 = vld [vmem:[%s1 + $0x1b8] sm:$0xff]
    %v81 = vld [vmem:[%s1 + $0x1c0] sm:$0xff]
    %v82 = vld [vmem:[%s1 + $0x1c8] sm:$0xff]
    %v83 = vld [vmem:[%s1 + $0x1d0] sm:$0xff]
    %v84 = vld [vmem:[%s1 + $0x1d8] sm:$0xff]
    %v85 = vld [vmem:[%s1 + $0x1e0] sm:$0xff]
    %v86 = vld [vmem:[%s1 + $0x1e8] sm:$0xff]
    %v87 = vld [vmem:[%s1 + $0x1f0] sm:$0xff]
    %v88 = vld [vmem:[%s1 + $0x1f8] sm:$0xff]
    %v89 = vld [vmem:[%s2] sm:$0x1]
    %v91 = vperm.slane %v89, 0
    %93 = vmatpush.msra.mxu0 %v40
    %94 = vmatpush.msra.mxu0 %v39
    %95 = vmatpush.msra.mxu0 %v38
    %96 = vmatpush.msra.mxu0 %v37
    %97 = vmatpush.msra.mxu0 %v36
    %98 = vmatpush.msra.mxu0 %v35
    %99 = vmatpush.msra.mxu0 %v34
    %100 = vmatpush.msra.mxu0 %v33
    %101 = vmatpush.msra.mxu0 %v32
    %102 = vmatpush.msra.mxu0 %v31
    %103 = vmatpush.msra.mxu0 %v30
    %104 = vmatpush.msra.mxu0 %v29
    %105 = vmatpush.msra.mxu0 %v28
    %106 = vmatpush.msra.mxu0 %v27
    %107 = vmatpush.msra.mxu0 %v26
    %108 = vmatpush.msra.mxu0 %v25
    %109 = vmatmul.f32.gmra.mxu0 %v21
    %v110 = vpop.f32.mrf.mxu0
    %v111 = vadd.f32 %v91, %v110
    %112 = vdwg.mxu0
    %113 = vmatpush.msra.mxu0 %v56
    %114 = vmatpush.msra.mxu0 %v55
    %115 = vmatpush.msra.mxu0 %v54
    %116 = vmatpush.msra.mxu0 %v53
    %117 = vmatpush.msra.mxu0 %v52
    %118 = vmatpush.msra.mxu0 %v51
    %119 = vmatpush.msra.mxu0 %v50
    %120 = vmatpush.msra.mxu0 %v49
    %121 = vmatpush.msra.mxu0 %v48
    %122 = vmatpush.msra.mxu0 %v47
    %123 = vmatpush.msra.mxu0 %v46
    %124 = vmatpush.msra.mxu0 %v45
    %125 = vmatpush.msra.mxu0 %v44
    %126 = vmatpush.msra.mxu0 %v43
    %127 = vmatpush.msra.mxu0 %v42
    %128 = vmatpush.msra.mxu0 %v41
    %129 = vmatmul.f32.gmra.mxu0 %v22
    %v130 = vpop.f32.mrf.mxu0
    %v131 = vadd.f32 %v111, %v130
    %132 = vdwg.mxu0
    %133 = vmatpush.msra.mxu0 %v72
    %134 = vmatpush.msra.mxu0 %v71
    %135 = vmatpush.msra.mxu0 %v70
    %136 = vmatpush.msra.mxu0 %v69
    %137 = vmatpush.msra.mxu0 %v68
    %138 = vmatpush.msra.mxu0 %v67
    %139 = vmatpush.msra.mxu0 %v66
    %140 = vmatpush.msra.mxu0 %v65
    %141 = vmatpush.msra.mxu0 %v64
    %142 = vmatpush.msra.mxu0 %v63
    %143 = vmatpush.msra.mxu0 %v62
    %144 = vmatpush.msra.mxu0 %v61
    %145 = vmatpush.msra.mxu0 %v60
    %146 = vmatpush.msra.mxu0 %v59
    %147 = vmatpush.msra.mxu0 %v58
    %148 = vmatpush.msra.mxu0 %v57
    %149 = vmatmul.f32.gmra.mxu0 %v23
    %v150 = vpop.f32.mrf.mxu0
    %v151 = vadd.f32 %v131, %v150
    %152 = vdwg.mxu0
    %153 = vmatpush.msra.mxu0 %v88
    %154 = vmatpush.msra.mxu0 %v87
    %155 = vmatpush.msra.mxu0 %v86
    %156 = vmatpush.msra.mxu0 %v85
    %157 = vmatpush.msra.mxu0 %v84
    %158 = vmatpush.msra.mxu0 %v83
    %159 = vmatpush.msra.mxu0 %v82
    %160 = vmatpush.msra.mxu0 %v81
    %161 = vmatpush.msra.mxu0 %v80
    %162 = vmatpush.msra.mxu0 %v79
    %163 = vmatpush.msra.mxu0 %v78
    %164 = vmatpush.msra.mxu0 %v77
    %165 = vmatpush.msra.mxu0 %v76
    %166 = vmatpush.msra.mxu0 %v75
    %167 = vmatpush.msra.mxu0 %v74
    %168 = vmatpush.msra.mxu0 %v73
    %169 = vmatmul.f32.gmra.mxu0 %v24
    %v170 = vpop.f32.mrf.mxu0
    %v171 = vadd.f32 %v151, %v170
    %172 = vdwg.mxu0
    %v173 = vmax.f32 %v171, 0.0
    %v174 = vand.u32 2147483647, %v171
    %v175 = vsub.f32 0.0, %v174
    %v176 = vmul.f32 %v175, 1.442695
    %v177 = vpow.pop %v176
    %v178 = vadd.f32 %v177, 1.0
    %v179 = vlog2.pop %v178
    %v180 = vmul.f32 %v179, 0.6931472
    %v181 = vmul.f32 -0.5, %v177
    %v182 = vadd.f32 %v181, 1.0
    %v183 = vmul.f32 %v182, %v177
    %v184 = vand.u32 2147483647, %v177
    %vm185 = vcmp.lt.f32.partialorder %v184, 0.0004427343
    %v186 = vsel %vm185, %v183, %v180
    %v187 = vadd.f32 %v173, %v186
    %v188 = vld [vmem:[%s3] sm:$0xff]
    %v189 = vld [vmem:[%s3 + $0x8] sm:$0xff]
    %v190 = vld [vmem:[%s3 + $0x10] sm:$0xff]
    %v191 = vld [vmem:[%s3 + $0x18] sm:$0xff]
    %v192 = vld [vmem:[%s4] sm:$0x1]
    %v194 = vperm.slane %v192, 0
    %vm196 = vcmask 261120
    %v198 = vsel %vm196, %v187, 0
    %200 = vmatpush.msra.mxu0 0.0
    %201 = vmatpush.msra.mxu0 0.0
    %202 = vmatpush.msra.mxu0 0.0
    %203 = vmatpush.msra.mxu0 0.0
    %204 = vmatpush.msra.mxu0 0.0
    %205 = vmatpush.msra.mxu0 0.0
    %206 = vmatpush.msra.mxu0 0.0
    %207 = vmatpush.msra.mxu0 0.0
    %208 = vmatpush.msra.mxu0 0.0
    %209 = vmatpush.msra.mxu0 0.0
    %210 = vmatpush.msra.mxu0 0.0
    %211 = vmatpush.msra.mxu0 0.0
    %212 = vmatpush.msra.mxu0 %v191
    %213 = vmatpush.msra.mxu0 %v190
    %214 = vmatpush.msra.mxu0 %v189
    %215 = vmatpush.msra.mxu0 %v188
    %216 = vmatmul.f32.gmra.mxu0 %v198
    %v217 = vpop.f32.mrf.mxu0
    %v218 = vadd.f32 %v194, %v217
    %219 = vdwg.mxu0
    %vm220 = vcmask 48128
    %221 = vst.msk [vmem:[#allocation2] sm:$0xff] %vm220, %v218
    // Predicated region
    $region22: #{tpu_custom_call.1} parent=1 // pred_check
      _
    $region23: #{tpu_custom_call.1} parent=1 // pred_check_branch
      %223 = sbr.rel (0) target = $region25
    $region24: #{tpu_custom_call.1} parent=1 // pred_region
      %225 = vsyncadd [#allocation3], 0
      %s227 = sshll.u32 [#allocation2], 4
      %s228 = int_to_ptr.vmem [resolvable:$true] %s227
      %s229 = sshll.u32 %s5, 4
      %s230 = int_to_ptr.hbm [resolvable:$true] %s229
      %232 = dma.vmem_to_hbm [thread:$0]  %s228, 128, %s230, [#allocation3]
    $region25: #{tpu_custom_call.1} parent=1 // pred_fallthru
      _
    // Predicated region
    $region26: #{tpu_custom_call.1} parent=1 // pred_check
      _
    $region27: #{tpu_custom_call.1} parent=1 // pred_check_branch
      %234 = sbr.rel (0) target = $region29
    $region28: #{tpu_custom_call.1} parent=1 // pred_region
      %236 = dma.done [#allocation3], 128
    $region29: #{tpu_custom_call.1} parent=1 // pred_fallthru
      _
    %237 = vsyncpa [#allocation3], 1

</llo_original>
